<compile_context>
chip_gen: v7x
topology: tpu7x:2x2x1
jax: 0.10.0
libtpu: 0.0.40
codegen_flags: <defaults>
</compile_context>

<pallas_src>
import functools

import jax
import jax.numpy as jnp
from jax.experimental import pallas as pl
from jax.experimental.pallas import tpu as pltpu


def _isomax_loss_kernel(logits_ref, tgt_ref, out_ref, *, entropic_scale):
    # logits_ref: (1, C, T)  -- classes on sublanes, pixels on lanes
    # tgt_ref:    (1, 1, T)  -- int32 target class per pixel (lane-dense)
    # out_ref:    (1, 1, 1, 1) -- partial sum of NLL for this block
    x = logits_ref[0].astype(jnp.float32) * entropic_scale      # (C, T)

    # softmax over the class (sublane) axis
    m = jnp.max(x, axis=0, keepdims=True)                       # (1, T)
    e = jnp.exp(x - m)                                          # (C, T)
    s = jnp.sum(e, axis=0, keepdims=True)                       # (1, T)

    # gather exp(x_target - m) via a class-index compare (pure VPU work)
    tgt = tgt_ref[0]                                            # (1, T) int32
    cls = jax.lax.broadcasted_iota(jnp.int32, x.shape, 0)       # (C, T)
    e_t = jnp.sum(jnp.where(cls == tgt, e, 0.0), axis=0, keepdims=True)

    p = e_t / s                                                 # (1, T)
    nll = -jnp.log(p + 1e-12)                                   # (1, T)

    # partial sum for this (batch, pixel-tile) block
    out_ref[0, 0] = jnp.sum(nll, axis=1, keepdims=True)         # (1, 1)


def _pick_tile_hw(hw, c, itemsize, max_tile=8192, vmem_budget_bytes=8 << 20):
    """Pick a pixel-tile width: as large as possible, lane-dense, and small
    enough that the double-buffered input set stays well inside VMEM (budget
    chosen conservatively so it also works with v7x's 64 MiB VMEM)."""
    per_px = 2 * (c * itemsize + 4)          # 2 buffers x (logits col + target)
    cap = min(max_tile, max(128, vmem_budget_bytes // per_px))
    if hw <= cap:
        return hw                            # full-extent block: always legal
    t = (cap // 128) * 128
    while t >= 128:
        if hw % t == 0:
            return t
        t -= 128
    # TODO(synk): pad + mask the ragged tail instead of requiring a divisor.
    raise ValueError(f"H*W={hw} has no 128-multiple divisor <= {cap}")


def isomax_plus_loss_second_part(logits, targets, entropic_scale=10.0,
                                 max_tile_hw=8192):
    """logits: (B, C, H, W) float; targets: (B, H, W) int -> scalar loss."""
    B, C, H, W = logits.shape
    HW = H * W
    N = B * HW
    itemsize = jnp.dtype(logits.dtype).itemsize

    # Free, contiguous reshapes (no transpose / extra HBM pass).
    logits3d = logits.reshape(B, C, HW)
    tgt3d = targets.reshape(B, 1, HW).astype(jnp.int32)

    tile = _pick_tile_hw(HW, C, itemsize, max_tile=max_tile_hw)
    n_tiles = HW // tile
    grid = (B, n_tiles)

    kernel = functools.partial(_isomax_loss_kernel,
                               entropic_scale=float(entropic_scale))

    cost = pl.CostEstimate(
        flops=7 * N * C,
        transcendentals=N * C + N,               # exp per logit + log per pixel
        bytes_accessed=N * C * itemsize + N * 4 + B * n_tiles * 4,
    )

    partials = pl.pallas_call(
        kernel,
        out_shape=jax.ShapeDtypeStruct((B, n_tiles, 1, 1), jnp.float32),
        grid_spec=pltpu.PrefetchScalarGridSpec(
            num_scalar_prefetch=0,
            grid=grid,
            in_specs=[
                pl.BlockSpec((1, C, tile), lambda b, j: (b, 0, j)),
                pl.BlockSpec((1, 1, tile), lambda b, j: (b, 0, j)),
            ],
            out_specs=pl.BlockSpec((1, 1, 1, 1), lambda b, j: (b, j, 0, 0)),
        ),
        compiler_params=pltpu.CompilerParams(
            dimension_semantics=("parallel", "parallel")),
        cost_estimate=cost,
    )(logits3d, tgt3d)

    # Final mean over all B*H*W pixels (tiny reduction done by XLA).
    return jnp.sum(partials) / jnp.float32(N)


def _reference(logits, targets, entropic_scale=10.0):
    B, C, H, W = logits.shape
    l2d = jnp.transpose(logits, (0, 2, 3, 1)).reshape(-1, C)
    t = targets.reshape(-1)
    probs = jax.nn.softmax(entropic_scale * l2d, axis=1)
    p_at = probs[jnp.arange(t.shape[0]), t]
    return -jnp.mean(jnp.log(p_at + 1e-12))


if __name__ == "__main__":
    key = jax.random.PRNGKey(0)
    k1, k2 = jax.random.split(key)
    B, C, H, W = 2, 4, 16, 16
    logits = jax.random.normal(k1, (B, C, H, W), dtype=jnp.float32)
    targets = jax.random.randint(k2, (B, H, W), 0, C, dtype=jnp.int32)

    loss = isomax_plus_loss_second_part(logits, targets, entropic_scale=10.0)
    jax.block_until_ready(loss)

    ref = _reference(logits, targets, entropic_scale=10.0)
    assert jnp.allclose(loss, ref, rtol=1e-5, atol=1e-5), (loss, ref)
    print("KERNEL_OK")
</pallas_src>

<mosaic_0001>
module attributes {stable_mosaic.version = 11 : i64} {
  func.func @_isomax_loss_kernel(%arg0: i32, %arg1: i32, %arg2: memref<1x4x256xf32, #tpu.memory_space<vmem>>, %arg3: memref<1x1x256xi32, #tpu.memory_space<vmem>>, %arg4: memref<1x1x1x1xf32, #tpu.memory_space<vmem>>) attributes {dimension_semantics = [#tpu.dimension_semantics<parallel>, #tpu.dimension_semantics<parallel>], iteration_bounds = array<i64: 2, 1>, scalar_prefetch = 0 : i64, scratch_operands = 0 : i64, tpu.core_type = #tpu.core_type<tc>, window_params = [{transform_indices = @transform_0, window_bounds = array<i64: 1, 4, 256>}, {transform_indices = @transform_1, window_bounds = array<i64: 1, 1, 256>}, {transform_indices = @transform_2, window_bounds = array<i64: 1, 1, 1, 1>}]} {
    %c0 = arith.constant 0 : index
    %c0_0 = arith.constant 0 : index
    %c0_1 = arith.constant 0 : index
    %0 = vector.load %arg2[%c0, %c0_0, %c0_1] : memref<1x4x256xf32, #tpu.memory_space<vmem>>, vector<1x4x256xf32>
    %1 = vector.shape_cast %0 : vector<1x4x256xf32> to vector<4x256xf32>
    %cst = arith.constant 1.000000e+01 : f32
    %2 = vector.broadcast %cst : f32 to vector<4x256xf32>
    %3 = arith.mulf %1, %2 : vector<4x256xf32>
    %cst_2 = arith.constant dense<0xFF800000> : vector<256xf32>
    %4 = vector.multi_reduction <maximumf>, %3, %cst_2 [0] : vector<4x256xf32> to vector<256xf32>
    %5 = vector.shape_cast %4 : vector<256xf32> to vector<1x256xf32>
    %6 = vector.broadcast %5 : vector<1x256xf32> to vector<4x256xf32>
    %7 = arith.subf %3, %6 : vector<4x256xf32>
    %8 = math.exp %7 : vector<4x256xf32>
    %cst_3 = arith.constant dense<0.000000e+00> : vector<256xf32>
    %9 = vector.multi_reduction <add>, %8, %cst_3 [0] : vector<4x256xf32> to vector<256xf32>
    %10 = vector.shape_cast %9 : vector<256xf32> to vector<1x256xf32>
    %c0_4 = arith.constant 0 : index
    %c0_5 = arith.constant 0 : index
    %c0_6 = arith.constant 0 : index
    %11 = vector.load %arg3[%c0_4, %c0_5, %c0_6] : memref<1x1x256xi32, #tpu.memory_space<vmem>>, vector<1x1x256xi32>
    %12 = vector.shape_cast %11 : vector<1x1x256xi32> to vector<1x256xi32>
    %13 = tpu.iota {dimensions = array<i32: 0>} : vector<4x256xi32>
    %14 = vector.broadcast %12 : vector<1x256xi32> to vector<4x256xi32>
    %15 = arith.cmpi eq, %13, %14 : vector<4x256xi32>
    %cst_7 = arith.constant 0.000000e+00 : f32
    %16 = vector.broadcast %cst_7 : f32 to vector<4x256xf32>
    %17 = arith.select %15, %8, %16 : vector<4x256xi1>, vector<4x256xf32>
    %cst_8 = arith.constant dense<0.000000e+00> : vector<256xf32>
    %18 = vector.multi_reduction <add>, %17, %cst_8 [0] : vector<4x256xf32> to vector<256xf32>
    %19 = vector.shape_cast %18 : vector<256xf32> to vector<1x256xf32>
    %20 = arith.divf %19, %10 : vector<1x256xf32>
    %cst_9 = arith.constant 9.99999996E-13 : f32
    %21 = vector.broadcast %cst_9 : f32 to vector<1x256xf32>
    %22 = arith.addf %20, %21 : vector<1x256xf32>
    %23 = math.log %22 : vector<1x256xf32>
    %cst_10 = arith.constant 0.000000e+00 : f32
    %24 = vector.broadcast %cst_10 : f32 to vector<1x256xf32>
    %25 = arith.subf %24, %23 : vector<1x256xf32>
    %cst_11 = arith.constant dense<0.000000e+00> : vector<1xf32>
    %26 = vector.multi_reduction <add>, %25, %cst_11 [1] : vector<1x256xf32> to vector<1xf32>
    %27 = vector.shape_cast %26 : vector<1xf32> to vector<1x1xf32>
    %c0_12 = arith.constant 0 : index
    %c0_13 = arith.constant 0 : index
    %c0_14 = arith.constant 0 : index
    %c0_15 = arith.constant 0 : index
    %28 = vector.load %arg4[%c0_12, %c0_13, %c0_14, %c0_15] : memref<1x1x1x1xf32, #tpu.memory_space<vmem>>, vector<1x1x1x1xf32>
    %29 = vector.shape_cast %28 : vector<1x1x1x1xf32> to vector<1x1xf32>
    %30 = vector.shape_cast %27 : vector<1x1xf32> to vector<1x1x1x1xf32>
    tpu.vector_store %arg4[%c0_12, %c0_13, %c0_14, %c0_15], %30 {strides = array<i32>} : memref<1x1x1x1xf32, #tpu.memory_space<vmem>>, vector<1x1x1x1xf32>,
    return
  }
  func.func @transform_0(%arg0: i32, %arg1: i32) -> (i32, i32, i32) {
    %c0_i32 = arith.constant 0 : i32
    %c0_i32_0 = arith.constant 0 : i32
    return %arg0, %c0_i32, %arg1 : i32, i32, i32
  }
  func.func @transform_1(%arg0: i32, %arg1: i32) -> (i32, i32, i32) {
    %c0_i32 = arith.constant 0 : i32
    %c0_i32_0 = arith.constant 0 : i32
    return %arg0, %c0_i32, %arg1 : i32, i32, i32
  }
  func.func @transform_2(%arg0: i32, %arg1: i32) -> (i32, i32, i32, i32) {
    %c0_i32 = arith.constant 0 : i32
    %c0_i32_0 = arith.constant 0 : i32
    %c0_i32_1 = arith.constant 0 : i32
    return %arg0, %arg1, %c0_i32, %c0_i32_0 : i32, i32, i32, i32
  }
}

</mosaic_0001>

<llo_original>
// kernel: tpu_custom_call.1
$region0: #{tpu_custom_call.1}
  #allocation0 [shape = 'u32[]', space=smem, size = 0x4, offset = 0x4, fixed_abs, tag = 'smem constant byte address 0x4 - core index']
  #allocation1 [shape = 'u32[144,128]{1,0:T(1,128)}', space=vmem, size = 0x12000, scoped, tag = 'internal scratch']
  %s0 = inlined_call_operand.hbm [shape: f32[2,4,256], index: 0, kind: input, shape index: {}]
  %s1 = inlined_call_operand.hbm [shape: s32[2,1,256], index: 1, kind: input, shape index: {}]
  %s2 = inlined_call_operand.vmem [shape: f32[2,1,1,1], index: 2, kind: output, shape index: {}]
  %s3 = sld [smem:[#allocation0]]
  $region49: #{tpu_custom_call.1} parent=0
    _
  %s5 = ssub.s32 1, %s3
  %s6 = scalar_select 0, %s5, %s3
  $region1: #{tpu_custom_call.1} parent=0
    #allocation2 [shape = 'u8[8192]{0}', space=vmem, size = 0x2000, scoped, tag = 'input window, operand 0']
    #allocation3 [shape = 's32[2]{0}', space=sflag, size = 0x8, scoped, tag = 'scoped memory for tpu_custom_call.1']
    #allocation4 [shape = 'u8[2048]{0}', space=vmem, size = 0x800, scoped, tag = 'input window, operand 1']
    #allocation5 [shape = 's32[2]{0}', space=sflag, size = 0x8, scoped, tag = 'scoped memory for tpu_custom_call.1']
    %7 = vsyncpa [#allocation3], 0
    %s8 = scalar_lea.sflag [#allocation3], 1
    %9 = vsyncpa %s8, 0
    %10 = vsyncpa [#allocation5], 0
    %s11 = scalar_lea.sflag [#allocation5], 1
    %12 = vsyncpa %s11, 0
    loop: start=0, step=1, limit=4
    $region2: #{tpu_custom_call.1} parent=1 // loop_pre_header
      _
    $region3: #{tpu_custom_call.1} parent=1 // loop_header
      %s14 = sphi 0, %s18
      %p15 = scmp.ge.s32.totalorder %s14, 4
      %s21 = sphi 0, %s33
      %s22 = sphi 0, %s29
      %s23 = sphi 0, %s21
      %s24 = sphi 0, %s22
      %s25 = sphi 0, %s23
      %s26 = sphi 0, %s24
      %s38 = sphi 0, %s40
      %s41 = sphi 0, %s38
      %s42 = sphi 0, %s41
      %s58 = sphi 0, %s42
      %s66 = sphi 0, %s68
      %s69 = sphi 0, %s66
      %s70 = sphi 0, %s69
      %s86 = sphi 0, %s70
      %s94 = sphi 0, %s96
      %s97 = sphi 0, %s94
      %s98 = sphi 0, %s97
      %s114 = sphi 0, %s98
    $region4: #{tpu_custom_call.1} parent=1 // loop_header_branch
      %17 = sbr.rel (%p15) target = $region8
    $region5: #{tpu_custom_call.1} parent=1 // loop_body
      %s19 = ssub.s32 %s14, 1
      %s20 = ssub.s32 %s14, 2
      %s27 = sadd.s32 1, %s22
      %p28 = scmp.ge.s32.totalorder %s27, 1
      %s29 = scalar_select %p28, 0, %s27
      %s30 = sadd.s32 1, %s21
      %s31 = scalar_select %p28, %s30, %s21
      %p32 = scmp.ge.s32.totalorder %s31, 2
      %s33 = scalar_select %p32, 0, %s31
      %s34 = ssub.s32 %s21, %s33
      %s35 = ssub.s32 %s22, %s29
      %s36 = sor.u32 %s34, %s35
      %p37 = scmp.eq.s32.totalorder %s36, 0
      %s39 = sadd.s32 %s38, 1
      %s40 = scalar_select %p37, %s38, %s39
      %p43 = pneg %p37
      %p44 = scmp.eq.s32.totalorder %s14, 1
      %p45 = por %p43, %p44
      %p46 = scmp.ne.s32.totalorder %s38, %s41
      %p47 = scmp.eq.s32.totalorder %s14, 0
      %p48 = por %p46, %p47
      %p49 = scmp.ne.s32.totalorder %s38, %s41
      %p50 = scmp.eq.s32.totalorder %s19, 1
      %p51 = por %p49, %p50
      %p52 = scmp.ne.s32.totalorder %s41, %s42
      %p53 = scmp.eq.s32.totalorder %s19, 0
      %p54 = por %p52, %p53
      %p55 = scmp.ne.s32.totalorder %s41, %s42
      %p56 = scmp.eq.s32.totalorder %s20, 1
      %p57 = por %p55, %p56
      %p59 = scmp.ne.s32.totalorder %s42, %s58
      %p60 = scmp.eq.s32.totalorder %s20, 0
      %p61 = por %p59, %p60
      %s62 = ssub.s32 %s21, %s33
      %s63 = ssub.s32 %s22, %s29
      %s64 = sor.u32 %s62, %s63
      %p65 = scmp.eq.s32.totalorder %s64, 0
      %s67 = sadd.s32 %s66, 1
      %s68 = scalar_select %p65, %s66, %s67
      %p71 = pneg %p65
      %p72 = scmp.eq.s32.totalorder %s14, 1
      %p73 = por %p71, %p72
      %p74 = scmp.ne.s32.totalorder %s66, %s69
      %p75 = scmp.eq.s32.totalorder %s14, 0
      %p76 = por %p74, %p75
      %p77 = scmp.ne.s32.totalorder %s66, %s69
      %p78 = scmp.eq.s32.totalorder %s19, 1
      %p79 = por %p77, %p78
      %p80 = scmp.ne.s32.totalorder %s69, %s70
      %p81 = scmp.eq.s32.totalorder %s19, 0
      %p82 = por %p80, %p81
      %p83 = scmp.ne.s32.totalorder %s69, %s70
      %p84 = scmp.eq.s32.totalorder %s20, 1
      %p85 = por %p83, %p84
      %p87 = scmp.ne.s32.totalorder %s70, %s86
      %p88 = scmp.eq.s32.totalorder %s20, 0
      %p89 = por %p87, %p88
      %s90 = ssub.s32 %s21, %s33
      %s91 = ssub.s32 %s22, %s29
      %s92 = sor.u32 %s90, %s91
      %p93 = scmp.eq.s32.totalorder %s92, 0
      %s95 = sadd.s32 %s94, 1
      %s96 = scalar_select %p93, %s94, %s95
      %p99 = pneg %p93
      %p100 = scmp.eq.s32.totalorder %s14, 1
      %p101 = por %p99, %p100
      %p102 = scmp.ne.s32.totalorder %s94, %s97
      %p103 = scmp.eq.s32.totalorder %s14, 0
      %p104 = por %p102, %p103
      %p105 = scmp.ne.s32.totalorder %s94, %s97
      %p106 = scmp.eq.s32.totalorder %s19, 1
      %p107 = por %p105, %p106
      %p108 = scmp.ne.s32.totalorder %s97, %s98
      %p109 = scmp.eq.s32.totalorder %s19, 0
      %p110 = por %p108, %p109
      %p111 = scmp.ne.s32.totalorder %s97, %s98
      %p112 = scmp.eq.s32.totalorder %s20, 1
      %p113 = por %p111, %p112
      %p115 = scmp.ne.s32.totalorder %s98, %s114
      %p116 = scmp.eq.s32.totalorder %s20, 0
      %p117 = por %p115, %p116
      %p118 = scmp.le.s32.totalorder 1, %s14
      %p119 = scmp.lt.s32.totalorder %s14, 3
      %p120 = pnand %p118, %p119
      %p121 = pneg %p120
      // Predicated region
      $region9: #{tpu_custom_call.1} parent=5 // pred_check
        _
      $region10: #{tpu_custom_call.1} parent=5 // pred_check_branch
        %123 = sbr.rel (%p120) target = $region12
      $region11: #{tpu_custom_call.1} parent=5 // pred_region
        %s124 = ssub.s32 %s14, 1
      $region12: #{tpu_custom_call.1} parent=5 // pred_fallthru
        _
      %p125 = scmp.lt.s32.totalorder %s14, 2
      // Predicated region
      $region13: #{tpu_custom_call.1} parent=5 // pred_check
        %p126 = pneg %p125
      $region14: #{tpu_custom_call.1} parent=5 // pred_check_branch
        %128 = sbr.rel (%p126) target = $region16
      $region15: #{tpu_custom_call.1} parent=5 // pred_region
        // Predicated region
        $region17: #{tpu_custom_call.1} parent=15 // pred_check
          %p129 = pneg %p48
        $region18: #{tpu_custom_call.1} parent=15 // pred_check_branch
          %131 = sbr.rel (%p129) target = $region20
        $region19: #{tpu_custom_call.1} parent=15 // pred_region
          %s132 = sand.u32 %s38, 1
          %s133 = scalar_lea.sflag [#allocation3], %s132
          %s134 = sand.u32 %s38, 1
          %s135 = smul.addr %s134, 8
          %s136 = scalar_lea.vmem [#allocation2], %s135
          %s137 = smul.u32 2, %s22
          %s139 = ssub.s32 128, 128
          %140 = vsyncadd %s133, %s139
          %s141 = smul.addr %s21, 2
          %s142 = sadd.s32 %s137, %s141
          %s143 = smul.addr %s142, 64
          %s144 = scalar_lea.hbm %s0, %s143
          %s146 = sshll.u32 %s136, 4
          %s147 = int_to_ptr.vmem [resolvable:$true] %s146
          %149 = dma.hbm_to_vmem [thread:$0]  %s144, 128, %s147, %s133
        $region20: #{tpu_custom_call.1} parent=15 // pred_fallthru
          _
        // Predicated region
        $region21: #{tpu_custom_call.1} parent=15 // pred_check
          %p150 = pneg %p76
        $region22: #{tpu_custom_call.1} parent=15 // pred_check_branch
          %152 = sbr.rel (%p150) target = $region24
        $region23: #{tpu_custom_call.1} parent=15 // pred_region
          %s153 = sand.u32 %s66, 1
          %s154 = scalar_lea.sflag [#allocation5], %s153
          %s155 = sand.u32 %s66, 1
          %s156 = smul.addr %s155, 2
          %s157 = scalar_lea.vmem [#allocation4], %s156
          %s158 = smul.u32 2, %s22
          %s160 = ssub.s32 32, 32
          %161 = vsyncadd %s154, %s160
          %s162 = smul.addr %s21, 2
          %s163 = sadd.s32 %s158, %s162
          %s164 = smul.addr %s163, 16
          %s165 = scalar_lea.hbm %s1, %s164
          %s167 = sshll.u32 %s157, 4
          %s168 = int_to_ptr.vmem [resolvable:$true] %s167
          %170 = dma.hbm_to_vmem [thread:$0]  %s165, 32, %s168, %s154
        $region24: #{tpu_custom_call.1} parent=15 // pred_fallthru
          _
      $region16: #{tpu_custom_call.1} parent=5 // pred_fallthru
        _
      %p171 = scmp.le.s32.totalorder 1, %s14
      %p172 = scmp.lt.s32.totalorder %s14, 3
      %p173 = pnand %p171, %p172
      %p174 = pneg %p173
      // Predicated region
      $region25: #{tpu_custom_call.1} parent=5 // pred_check
        _
      $region26: #{tpu_custom_call.1} parent=5 // pred_check_branch
        %176 = sbr.rel (%p173) target = $region28
      $region27: #{tpu_custom_call.1} parent=5 // pred_region
        %s177 = ssub.s32 %s14, 1
        %s178 = sand.u32 %s41, 1
        %s179 = scalar_lea.sflag [#allocation3], %s178
        %s180 = sand.u32 %s41, 1
        %s181 = smul.addr %s180, 8
        %s182 = scalar_lea.vmem [#allocation2], %s181
        // Predicated region
        $region29: #{tpu_custom_call.1} parent=27 // pred_check
          %p183 = pneg %p54
        $region30: #{tpu_custom_call.1} parent=27 // pred_check_branch
          %185 = sbr.rel (%p183) target = $region32
        $region31: #{tpu_custom_call.1} parent=27 // pred_region
          %186 = dma.done %s179, 128
        $region32: #{tpu_custom_call.1} parent=27 // pred_fallthru
          _
        %s187 = sand.u32 %s69, 1
        %s188 = scalar_lea.sflag [#allocation5], %s187
        %s189 = sand.u32 %s69, 1
        %s190 = smul.addr %s189, 2
        %s191 = scalar_lea.vmem [#allocation4], %s190
        // Predicated region
        $region33: #{tpu_custom_call.1} parent=27 // pred_check
          %p192 = pneg %p82
        $region34: #{tpu_custom_call.1} parent=27 // pred_check_branch
          %194 = sbr.rel (%p192) target = $region36
        $region35: #{tpu_custom_call.1} parent=27 // pred_region
          %195 = dma.done %s188, 32
        $region36: #{tpu_custom_call.1} parent=27 // pred_fallthru
          _
        %s196 = sand.u32 %s41, 1
        %s197 = scalar_lea.sflag [#allocation3], %s196
        %s198 = sand.u32 %s41, 1
        %s199 = smul.addr %s198, 8
        %s200 = scalar_lea.vmem [#allocation2], %s199
        %p201 = pneg %p54
        %p202 = pneg %p51
        %s203 = sand.u32 %s69, 1
        %s204 = scalar_lea.sflag [#allocation5], %s203
        %s205 = sand.u32 %s69, 1
        %s206 = smul.addr %s205, 2
        %s207 = scalar_lea.vmem [#allocation4], %s206
        %p208 = pneg %p82
        %p209 = pneg %p79
        %p210 = pneg %p110
        %p211 = pneg %p107
        %p212 = scmp.lt.s32.totalorder %s23, 1
        %s213 = scalar_select %p212, %s23, 1
        %p214 = scmp.lt.s32.totalorder %s24, 0
        %s215 = scalar_select %p214, %s24, 0
        %s216 = sadd.s32 %s215, %s213
        %s217 = scalar_lea.vmem %s2, %s216
        %s218 = smul.u32 2, %s24
        %s219 = smul.u32 2, %s24
        %p220 = scmp.lt.s32.totalorder %s23, 1
        %s221 = scalar_select %p220, %s23, 1
        %p222 = scmp.lt.s32.totalorder %s24, 0
        %s223 = scalar_select %p222, %s24, 0
        %s224 = sadd.s32 %s223, %s221
        %s225 = scalar_lea.vmem %s2, %s224
        %v226 = vld [vmem:[%s182] sm:$0xff]
        %v227 = vmul.f32 %v226, 10.0
        %v229 = vcombine.high %v227, %v227
        %vm231 = vcmask 1043456
        %v232 = vsel %vm231, %v227, -inf
        %v233 = vrot.slane %v232, 4
        %v234 = vmax.f32 %v232, %v233
        %v235 = vrot.slane %v234, 2
        %v236 = vmax.f32 %v234, %v235
        %v237 = vrot.slane %v236, 1
        %v238 = vmax.f32 %v236, %v237
        %v239 = vsel %vm231, %v229, -inf
        %v240 = vrot.slane %v239, 4
        %v241 = vmax.f32 %v239, %v240
        %v242 = vrot.slane %v241, 2
        %v243 = vmax.f32 %v241, %v242
        %v244 = vrot.slane %v243, 1
        %v245 = vmax.f32 %v243, %v244
        %v248 = vcombine.low %v238, %v245
        %v250 = vsub.f32 %v227, %v248
        %v251 = vmul.f32 %v250, 1.442695
        %v252 = vpow.pop %v251
        %v254 = vcombine.high %v252, %v252
        %v256 = vsel %vm231, %v252, 0.0
        %v257 = vrot.slane %v256, 4
        %v258 = vadd.f32 %v256, %v257
        %v259 = vrot.slane %v258, 2
        %v260 = vadd.f32 %v258, %v259
        %v261 = vrot.slane %v260, 1
        %v262 = vadd.f32 %v260, %v261
        %v263 = vsel %vm231, %v254, 0.0
        %v264 = vrot.slane %v263, 4
        %v265 = vadd.f32 %v263, %v264
        %v266 = vrot.slane %v265, 2
        %v267 = vadd.f32 %v265, %v266
        %v268 = vrot.slane %v267, 1
        %v269 = vadd.f32 %v267, %v268
        %v270 = vld [vmem:[%s191] sm:$0x3]
        %v271 = vlaneseq
        %v272 = vshrl.u32 %v271, 7
        %v273 = vlaneseq
        %v274 = vshrl.u32 %v273, 7
        %v275 = vsub.s32 0, %v274
        %v276 = vrot.slane %v270, %v275
        %v277 = vlaneseq
        %v278 = vshrl.u32 %v277, 7
        %v279 = vsub.s32 1, %v278
        %v280 = vrot.slane %v270, %v279
        %vm281 = vcmp.eq.s32.totalorder %v272, %v276
        %vm282 = vcmp.eq.s32.totalorder %v272, %v280
        %v283 = vsel %vm281, %v252, 0.0
        %v284 = vsel %vm282, %v254, 0.0
        %v285 = vsel %vm231, %v283, 0.0
        %v286 = vrot.slane %v285, 4
        %v287 = vadd.f32 %v285, %v286
        %v288 = vrot.slane %v287, 2
        %v289 = vadd.f32 %v287, %v288
        %v290 = vrot.slane %v289, 1
        %v291 = vadd.f32 %v289, %v290
        %v292 = vsel %vm231, %v284, 0.0
        %v293 = vrot.slane %v292, 4
        %v294 = vadd.f32 %v292, %v293
        %v295 = vrot.slane %v294, 2
        %v296 = vadd.f32 %v294, %v295
        %v297 = vrot.slane %v296, 1
        %v298 = vadd.f32 %v296, %v297
        %v299 = vrcp.pop %v262
        %v300 = vmul.f32 %v291, %v299
        %v301 = vrcp.pop %v269
        %v302 = vmul.f32 %v298, %v301
        %v303 = vadd.f32 %v300, 1e-12
        %v304 = vadd.f32 %v302, 1e-12
        %v305 = vlog2.pop %v303
        %v306 = vmul.f32 %v305, 0.6931472
        %v307 = vlog2.pop %v304
        %v308 = vmul.f32 %v307, 0.6931472
        %v309 = vsub.f32 0.0, %v306
        %v310 = vsub.f32 0.0, %v308
        %v311 = vadd.f32 %v309, %v310
        %312 = vadd.xlane.f32.xlu0 %v311
        %v313 = vpop.xlane.xlu0 %312
        %vm314 = vcmask 0
        %315 = vst.msk [vmem:[%s225] sm:$0x1] %vm314, %v313
        %p316 = scmp.lt.s32.totalorder %s23, 1
        %s317 = scalar_select %p316, %s23, 1
        %p318 = scmp.lt.s32.totalorder %s24, 0
        %s319 = scalar_select %p318, %s24, 0
        %s320 = sadd.s32 %s319, %s317
        %s321 = scalar_lea.vmem %s2, %s320
        // Predicated region
        $region37: #{tpu_custom_call.1} parent=27 // pred_check
          %p322 = pneg %p107
        $region38: #{tpu_custom_call.1} parent=27 // pred_check_branch
          %324 = sbr.rel (%p322) target = $region40
        $region39: #{tpu_custom_call.1} parent=27 // pred_region
          _
        $region40: #{tpu_custom_call.1} parent=27 // pred_fallthru
          _
      $region28: #{tpu_custom_call.1} parent=5 // pred_fallthru
        _
      %p325 = scmp.le.s32.totalorder 2, %s14
      // Predicated region
      $region41: #{tpu_custom_call.1} parent=5 // pred_check
        %p326 = pneg %p325
      $region42: #{tpu_custom_call.1} parent=5 // pred_check_branch
        %328 = sbr.rel (%p326) target = $region44
      $region43: #{tpu_custom_call.1} parent=5 // pred_region
        %s329 = ssub.s32 %s14, 2
        // Predicated region
        $region45: #{tpu_custom_call.1} parent=43 // pred_check
          %p330 = pneg %p113
        $region46: #{tpu_custom_call.1} parent=43 // pred_check_branch
          %332 = sbr.rel (%p330) target = $region48
        $region47: #{tpu_custom_call.1} parent=43 // pred_region
          %p333 = scmp.lt.s32.totalorder %s25, 1
          %s334 = scalar_select %p333, %s25, 1
          %p335 = scmp.lt.s32.totalorder %s26, 0
          %s336 = scalar_select %p335, %s26, 0
          %s337 = sadd.s32 %s336, %s334
          %s338 = scalar_lea.vmem %s2, %s337
        $region48: #{tpu_custom_call.1} parent=43 // pred_fallthru
          _
      $region44: #{tpu_custom_call.1} parent=5 // pred_fallthru
        _
    $region6: #{tpu_custom_call.1} parent=1 // loop_footer
      %s18 = sadd.s32 1, %s14
    $region7: #{tpu_custom_call.1} parent=1 // loop_footer_branch
      %13 = sbr.rel target = $region3
    $region8: #{tpu_custom_call.1} parent=1 // loop_exit
      _
    %339 = vsyncpa [#allocation3], 1
    %s340 = scalar_lea.sflag [#allocation3], 1
    %341 = vsyncpa %s340, 1
    %342 = vsyncpa [#allocation5], 1
    %s343 = scalar_lea.sflag [#allocation5], 1
    %344 = vsyncpa %s343, 1

</llo_original>
